<compile_context>
chip_gen: v5e
topology: v5e:2x2
jax: 0.10.0
libtpu: 0.0.40
codegen_flags: <defaults>
</compile_context>

<pallas_src>
import jax
import jax.numpy as jnp
from jax.experimental import pallas as pl
from jax.experimental.pallas import tpu as pltpu


def _qfunction_kernel(obs_ref, act_ref, w1o_ref, w1a_ref, b1_ref,
                      w2_ref, b2_ref, w3r_ref, b3_ref, out_ref):
    """Fused 3-layer MLP over one batch tile of TB rows.

    Layer 1 implements the obs/act concat implicitly:
        h1 = obs @ W1[:obs_dim] + act @ W1[obs_dim:] + b1
    Layer 3 is computed as (1, H2) @ (TB, H2)^T so the (1, TB) result is
    lane-dense (batch on lanes) and the output store is unmasked.
    """
    h1 = (jnp.dot(obs_ref[...], w1o_ref[...], preferred_element_type=jnp.float32)
          + jnp.dot(act_ref[...], w1a_ref[...], preferred_element_type=jnp.float32)
          + b1_ref[...])
    h1 = jnp.maximum(h1, 0.0)

    h2 = jnp.dot(h1, w2_ref[...], preferred_element_type=jnp.float32) + b2_ref[...]
    h2 = jnp.maximum(h2, 0.0)

    # (1, H2) x (TB, H2) contracted on last dims -> (1, TB)   (A @ B^T form)
    q_t = jax.lax.dot_general(
        w3r_ref[...], h2,
        dimension_numbers=(((1,), (1,)), ((), ())),
        preferred_element_type=jnp.float32)
    q_t = q_t + b3_ref[...]                      # (1, 1) broadcast over lanes

    out_ref[...] = q_t.astype(out_ref.dtype)     # (1, TB) lane-dense store


def _round_up(x, m):
    return ((x + m - 1) // m) * m


def qfunction_forward(obs, act, params, *, max_batch_tile=1024):
    """concat-free wrapper: one batch-tiled pallas_call over the fused MLP."""
    w1o, w1a, b1, w2, b2, w3r, b3 = params
    batch, obs_dim = obs.shape
    act_dim = act.shape[1]
    h1 = w1o.shape[1]
    h2 = w2.shape[1]

    # Batch tile: multiple of 128 so the (1, tb) output store is lane-dense and
    # unmasked; capped so huge batches still pipeline over a grid, while small
    # batches pad to a single small tile instead of a full max-size tile.
    tb = min(_round_up(batch, 128), _round_up(max_batch_tile, 128))
    g = pl.cdiv(batch, tb)
    b_pad = g * tb
    if b_pad != batch:
        # Tail handling: pad so every grid step is a full, aligned tile; padded
        # rows are computed (cheap) and sliced off below.
        obs = jnp.pad(obs, ((0, b_pad - batch), (0, 0)))
        act = jnp.pad(act, ((0, b_pad - batch), (0, 0)))

    flops = 2 * b_pad * (obs_dim * h1 + act_dim * h1 + h1 * h2 + h2)
    bytes_accessed = 4 * (b_pad * (obs_dim + act_dim + 1)
                          + obs_dim * h1 + act_dim * h1 + h1 * h2 + h2
                          + h1 + h2 + 1)

    const2 = lambda i: (0, 0)   # weights/biases: same block every step (resident)

    out = pl.pallas_call(
        _qfunction_kernel,
        out_shape=jax.ShapeDtypeStruct((g, 1, tb), jnp.float32),
        grid=(g,),
        in_specs=[
            pl.BlockSpec((tb, obs_dim), lambda i: (i, 0)),   # obs batch tile
            pl.BlockSpec((tb, act_dim), lambda i: (i, 0)),   # act batch tile
            pl.BlockSpec(w1o.shape, const2),                 # W1[:obs_dim]
            pl.BlockSpec(w1a.shape, const2),                 # W1[obs_dim:]
            pl.BlockSpec(b1.shape, const2),
            pl.BlockSpec(w2.shape, const2),
            pl.BlockSpec(b2.shape, const2),
            pl.BlockSpec(w3r.shape, const2),                 # W3 as (1, H2) row
            pl.BlockSpec(b3.shape, const2),
        ],
        # (None, 1, tb): leading dim squeezed; kernel sees a (1, tb) lane-dense block.
        out_specs=pl.BlockSpec((None, 1, tb), lambda i: (i, 0, 0)),
        compiler_params=pltpu.CompilerParams(
            dimension_semantics=("parallel",)),
        cost_estimate=pl.CostEstimate(
            flops=flops, transcendentals=0, bytes_accessed=bytes_accessed),
    )(obs, act, w1o, w1a, b1, w2, b2, w3r, b3)

    # (g, 1, tb) -> (g*tb,) -> drop padded rows; matches torch.squeeze(q, -1).
    return out.reshape(-1)[:batch]


def init_params(key, obs_dim, act_dim, hidden_sizes, out_dim=1):
    """PyTorch-Linear-style uniform init.

    Weights stored as (in, out); W1 is pre-split into obs/act halves and W3 is
    stored as a (out_dim, H2) row so the kernel never concatenates or transposes.
    """
    h1, h2 = hidden_sizes
    in_dim = obs_dim + act_dim
    layer_dims = [(in_dim, h1), (h1, h2), (h2, out_dim)]
    ws, bs = [], []
    for fan_in, fan_out in layer_dims:
        key, kw, kb = jax.random.split(key, 3)
        bound = 1.0 / (fan_in ** 0.5)
        ws.append(jax.random.uniform(kw, (fan_in, fan_out), jnp.float32, -bound, bound))
        bs.append(jax.random.uniform(kb, (1, fan_out), jnp.float32, -bound, bound))
    w1, w2, w3 = ws
    b1, b2, b3 = bs
    w1o, w1a = w1[:obs_dim], w1[obs_dim:]
    w3r = jnp.transpose(w3)                      # (out_dim, h2)
    return (w1o, w1a, b1, w2, b2, w3r, b3)


def qfunction_reference(obs, act, params):
    """Pure-JAX reference matching the original concat-then-MLP semantics."""
    w1o, w1a, b1, w2, b2, w3r, b3 = params
    w1 = jnp.concatenate([w1o, w1a], axis=0)
    x = jnp.concatenate([obs, act], axis=-1)
    h1 = jnp.maximum(x @ w1 + b1, 0.0)
    h2 = jnp.maximum(h1 @ w2 + b2, 0.0)
    q = h2 @ w3r.T + b3
    return jnp.squeeze(q, -1)


if __name__ == "__main__":
    # Small shapes consistent with the module: flat obs space, MLP hidden (32, 32),
    # split_reward_streams=False -> output width 1.
    batch, obs_dim, act_dim = 2, 16, 4
    hidden_sizes = (32, 32)

    key = jax.random.PRNGKey(0)
    k_obs, k_act, k_params = jax.random.split(key, 3)
    obs = jax.random.normal(k_obs, (batch, obs_dim), jnp.float32)
    act = jax.random.normal(k_act, (batch, act_dim), jnp.float32)
    params = init_params(k_params, obs_dim, act_dim, hidden_sizes, out_dim=1)

    q = qfunction_forward(obs, act, params)
    q = jax.block_until_ready(q)

    q_ref = qfunction_reference(obs, act, params)
    assert q.shape == (batch,), f"bad output shape {q.shape}"
    assert jnp.allclose(q, q_ref, atol=1e-5, rtol=1e-5), "kernel mismatch vs reference"

    print("KERNEL_OK")
</pallas_src>

<mosaic_0001>
module attributes {stable_mosaic.version = 11 : i64} {
  func.func @_qfunction_kernel(%arg0: i32, %arg1: memref<128x16xf32, #tpu.memory_space<vmem>>, %arg2: memref<128x4xf32, #tpu.memory_space<vmem>>, %arg3: memref<16x32xf32, #tpu.memory_space<vmem>>, %arg4: memref<4x32xf32, #tpu.memory_space<vmem>>, %arg5: memref<1x32xf32, #tpu.memory_space<vmem>>, %arg6: memref<32x32xf32, #tpu.memory_space<vmem>>, %arg7: memref<1x32xf32, #tpu.memory_space<vmem>>, %arg8: memref<1x32xf32, #tpu.memory_space<vmem>>, %arg9: memref<1x1xf32, #tpu.memory_space<vmem>>, %arg10: memref<1x1x128xf32, #tpu.memory_space<vmem>>) attributes {dimension_semantics = [#tpu.dimension_semantics<parallel>], iteration_bounds = array<i64: 1>, scalar_prefetch = 0 : i64, scratch_operands = 0 : i64, tpu.core_type = #tpu.core_type<tc>, window_params = [{transform_indices = @transform_0, window_bounds = array<i64: 128, 16>}, {transform_indices = @transform_1, window_bounds = array<i64: 128, 4>}, {pipeline_mode = #tpu.pipeline_mode<synchronous>, transform_indices = @transform_2, window_bounds = array<i64: 16, 32>}, {pipeline_mode = #tpu.pipeline_mode<synchronous>, transform_indices = @transform_3, window_bounds = array<i64: 4, 32>}, {pipeline_mode = #tpu.pipeline_mode<synchronous>, transform_indices = @transform_4, window_bounds = array<i64: 1, 32>}, {pipeline_mode = #tpu.pipeline_mode<synchronous>, transform_indices = @transform_5, window_bounds = array<i64: 32, 32>}, {pipeline_mode = #tpu.pipeline_mode<synchronous>, transform_indices = @transform_6, window_bounds = array<i64: 1, 32>}, {pipeline_mode = #tpu.pipeline_mode<synchronous>, transform_indices = @transform_7, window_bounds = array<i64: 1, 32>}, {pipeline_mode = #tpu.pipeline_mode<synchronous>, transform_indices = @transform_8, window_bounds = array<i64: 1, 1>}, {transform_indices = @transform_9, window_bounds = array<i64: 1, 1, 128>}]} {
    %c0 = arith.constant 0 : index
    %c0_0 = arith.constant 0 : index
    %0 = vector.load %arg1[%c0, %c0_0] : memref<128x16xf32, #tpu.memory_space<vmem>>, vector<128x16xf32>
    %c0_1 = arith.constant 0 : index
    %c0_2 = arith.constant 0 : index
    %1 = vector.load %arg3[%c0_1, %c0_2] : memref<16x32xf32, #tpu.memory_space<vmem>>, vector<16x32xf32>
    %cst = arith.constant dense<0.000000e+00> : vector<128x32xf32>
    %2 = tpu.matmul %0, %1, %cst {dimension_numbers = #tpu.dot_dimension_numbers<[1], [0], [0], [1], [0, 0, 1, 1], [], []>} : vector<128x16xf32>, vector<16x32xf32>, vector<128x32xf32> -> vector<128x32xf32>
    %c0_3 = arith.constant 0 : index
    %c0_4 = arith.constant 0 : index
    %3 = vector.load %arg2[%c0_3, %c0_4] : memref<128x4xf32, #tpu.memory_space<vmem>>, vector<128x4xf32>
    %c0_5 = arith.constant 0 : index
    %c0_6 = arith.constant 0 : index
    %4 = vector.load %arg4[%c0_5, %c0_6] : memref<4x32xf32, #tpu.memory_space<vmem>>, vector<4x32xf32>
    %cst_7 = arith.constant dense<0.000000e+00> : vector<128x32xf32>
    %5 = tpu.matmul %3, %4, %cst_7 {dimension_numbers = #tpu.dot_dimension_numbers<[1], [0], [0], [1], [0, 0, 1, 1], [], []>} : vector<128x4xf32>, vector<4x32xf32>, vector<128x32xf32> -> vector<128x32xf32>
    %6 = arith.addf %2, %5 : vector<128x32xf32>
    %c0_8 = arith.constant 0 : index
    %c0_9 = arith.constant 0 : index
    %7 = vector.load %arg5[%c0_8, %c0_9] : memref<1x32xf32, #tpu.memory_space<vmem>>, vector<1x32xf32>
    %8 = vector.broadcast %7 : vector<1x32xf32> to vector<128x32xf32>
    %9 = arith.addf %6, %8 : vector<128x32xf32>
    %cst_10 = arith.constant 0.000000e+00 : f32
    %10 = vector.broadcast %cst_10 : f32 to vector<128x32xf32>
    %11 = arith.maximumf %9, %10 : vector<128x32xf32>
    %c0_11 = arith.constant 0 : index
    %c0_12 = arith.constant 0 : index
    %12 = vector.load %arg6[%c0_11, %c0_12] : memref<32x32xf32, #tpu.memory_space<vmem>>, vector<32x32xf32>
    %cst_13 = arith.constant dense<0.000000e+00> : vector<128x32xf32>
    %13 = tpu.matmul %11, %12, %cst_13 {dimension_numbers = #tpu.dot_dimension_numbers<[1], [0], [0], [1], [0, 0, 1, 1], [], []>} : vector<128x32xf32>, vector<32x32xf32>, vector<128x32xf32> -> vector<128x32xf32>
    %c0_14 = arith.constant 0 : index
    %c0_15 = arith.constant 0 : index
    %14 = vector.load %arg7[%c0_14, %c0_15] : memref<1x32xf32, #tpu.memory_space<vmem>>, vector<1x32xf32>
    %15 = vector.broadcast %14 : vector<1x32xf32> to vector<128x32xf32>
    %16 = arith.addf %13, %15 : vector<128x32xf32>
    %cst_16 = arith.constant 0.000000e+00 : f32
    %17 = vector.broadcast %cst_16 : f32 to vector<128x32xf32>
    %18 = arith.maximumf %16, %17 : vector<128x32xf32>
    %c0_17 = arith.constant 0 : index
    %c0_18 = arith.constant 0 : index
    %19 = vector.load %arg8[%c0_17, %c0_18] : memref<1x32xf32, #tpu.memory_space<vmem>>, vector<1x32xf32>
    %cst_19 = arith.constant dense<0.000000e+00> : vector<1x128xf32>
    %20 = tpu.matmul %19, %18, %cst_19 {dimension_numbers = #tpu.dot_dimension_numbers<[1], [1], [0], [0], [0, 0, 1, 0], [], []>} : vector<1x32xf32>, vector<128x32xf32>, vector<1x128xf32> -> vector<1x128xf32>
    %c0_20 = arith.constant 0 : index
    %c0_21 = arith.constant 0 : index
    %21 = vector.load %arg9[%c0_20, %c0_21] : memref<1x1xf32, #tpu.memory_space<vmem>>, vector<1x1xf32>
    %22 = vector.broadcast %21 : vector<1x1xf32> to vector<1x128xf32>
    %23 = arith.addf %20, %22 : vector<1x128xf32>
    %c0_22 = arith.constant 0 : index
    %c0_23 = arith.constant 0 : index
    %c0_24 = arith.constant 0 : index
    %24 = vector.load %arg10[%c0_22, %c0_23, %c0_24] : memref<1x1x128xf32, #tpu.memory_space<vmem>>, vector<1x1x128xf32>
    %25 = vector.shape_cast %24 : vector<1x1x128xf32> to vector<1x128xf32>
    %26 = vector.shape_cast %23 : vector<1x128xf32> to vector<1x1x128xf32>
    tpu.vector_store %arg10[%c0_22, %c0_23, %c0_24], %26 {strides = array<i32>} : memref<1x1x128xf32, #tpu.memory_space<vmem>>, vector<1x1x128xf32>,
    return
  }
  func.func @transform_0(%arg0: i32) -> (i32, i32) {
    %c0_i32 = arith.constant 0 : i32
    %c0_i32_0 = arith.constant 0 : i32
    return %arg0, %c0_i32 : i32, i32
  }
  func.func @transform_1(%arg0: i32) -> (i32, i32) {
    %c0_i32 = arith.constant 0 : i32
    %c0_i32_0 = arith.constant 0 : i32
    return %arg0, %c0_i32 : i32, i32
  }
  func.func @transform_2(%arg0: i32) -> (i32, i32) {
    %c0_i32 = arith.constant 0 : i32
    %c0_i32_0 = arith.constant 0 : i32
    %c0_i32_1 = arith.constant 0 : i32
    return %c0_i32, %c0_i32_0 : i32, i32
  }
  func.func @transform_3(%arg0: i32) -> (i32, i32) {
    %c0_i32 = arith.constant 0 : i32
    %c0_i32_0 = arith.constant 0 : i32
    %c0_i32_1 = arith.constant 0 : i32
    return %c0_i32, %c0_i32_0 : i32, i32
  }
  func.func @transform_4(%arg0: i32) -> (i32, i32) {
    %c0_i32 = arith.constant 0 : i32
    %c0_i32_0 = arith.constant 0 : i32
    %c0_i32_1 = arith.constant 0 : i32
    return %c0_i32, %c0_i32_0 : i32, i32
  }
  func.func @transform_5(%arg0: i32) -> (i32, i32) {
    %c0_i32 = arith.constant 0 : i32
    %c0_i32_0 = arith.constant 0 : i32
    %c0_i32_1 = arith.constant 0 : i32
    return %c0_i32, %c0_i32_0 : i32, i32
  }
  func.func @transform_6(%arg0: i32) -> (i32, i32) {
    %c0_i32 = arith.constant 0 : i32
    %c0_i32_0 = arith.constant 0 : i32
    %c0_i32_1 = arith.constant 0 : i32
    return %c0_i32, %c0_i32_0 : i32, i32
  }
  func.func @transform_7(%arg0: i32) -> (i32, i32) {
    %c0_i32 = arith.constant 0 : i32
    %c0_i32_0 = arith.constant 0 : i32
    %c0_i32_1 = arith.constant 0 : i32
    return %c0_i32, %c0_i32_0 : i32, i32
  }
  func.func @transform_8(%arg0: i32) -> (i32, i32) {
    %c0_i32 = arith.constant 0 : i32
    %c0_i32_0 = arith.constant 0 : i32
    %c0_i32_1 = arith.constant 0 : i32
    return %c0_i32, %c0_i32_0 : i32, i32
  }
  func.func @transform_9(%arg0: i32) -> (i32, i32, i32) {
    %c0_i32 = arith.constant 0 : i32
    %c0_i32_0 = arith.constant 0 : i32
    %c0_i32_1 = arith.constant 0 : i32
    return %arg0, %c0_i32, %c0_i32_0 : i32, i32, i32
  }
}

</mosaic_0001>

<llo_original>
// kernel: tpu_custom_call.1
$region0: #{tpu_custom_call.1}
  #allocation0 [shape = 'u32[]', space=smem, size = 0x4, offset = 0x4, fixed_abs, tag = 'smem constant byte address 0x4 - core index']
  #allocation1 [shape = 'u32[72,128]{1,0:T(1,128)}', space=vmem, size = 0x9000, scoped, tag = 'internal scratch']
  #allocation2 [shape = 'f32[1,1]{1,0:T(1,128)S(1)}', space=vmem, size = 0x200, scoped, tag = 'scoped memory for tpu_custom_call.1']
  %s0 = inlined_call_operand.vmem [shape: f32[128,16], index: 0, kind: input, shape index: {}]
  %s1 = inlined_call_operand.vmem [shape: f32[128,4], index: 1, kind: input, shape index: {}]
  %s2 = inlined_call_operand.vmem [shape: f32[16,32], index: 2, kind: input, shape index: {}]
  %s3 = inlined_call_operand.vmem [shape: f32[4,32], index: 3, kind: input, shape index: {}]
  %s4 = inlined_call_operand.vmem [shape: f32[1,32], index: 4, kind: input, shape index: {}]
  %s5 = inlined_call_operand.vmem [shape: f32[32,32], index: 5, kind: input, shape index: {}]
  %s6 = inlined_call_operand.vmem [shape: f32[1,32], index: 6, kind: input, shape index: {}]
  %s7 = inlined_call_operand.vmem [shape: f32[1,32], index: 7, kind: input, shape index: {}]
  %s8 = inlined_call_operand.<no memory space> [shape: f32[1,1], index: 8, kind: input, shape index: {}]
  %s9 = inlined_call_operand.hbm [shape: f32[1,1,128], index: 9, kind: output, shape index: {}]
  %s10 = sld [smem:[#allocation0]]
  $region46: #{tpu_custom_call.1} parent=0
    _
  %s12 = ssub.s32 1, %s10
  %s13 = scalar_select 0, %s12, %s10
  %v14 = vstv %s8
  %15 = vst [vmem:[#allocation2] sm:$0x1] %v14
  $region1: #{tpu_custom_call.1} parent=0
    #allocation3 [shape = 'u8[512]{0}', space=vmem, size = 0x400, scoped, tag = 'output window, operand 0, single buffered']
    #allocation4 [shape = 's32[1]{0}', space=sflag, size = 0x4, scoped, tag = 'scoped memory for tpu_custom_call.1']
    %16 = vsyncpa [#allocation4], 0
    // Predicated region
    $region2: #{tpu_custom_call.1} parent=1 // pred_check
      _
    $region3: #{tpu_custom_call.1} parent=1 // pred_check_branch
      %18 = sbr.rel (0) target = $region5
    $region4: #{tpu_custom_call.1} parent=1 // pred_region
      _
    $region5: #{tpu_custom_call.1} parent=1 // pred_fallthru
      _
    // Predicated region
    $region6: #{tpu_custom_call.1} parent=1 // pred_check
      _
    $region7: #{tpu_custom_call.1} parent=1 // pred_check_branch
      %20 = sbr.rel (0) target = $region9
    $region8: #{tpu_custom_call.1} parent=1 // pred_region
      _
    $region9: #{tpu_custom_call.1} parent=1 // pred_fallthru
      _
    // Predicated region
    $region10: #{tpu_custom_call.1} parent=1 // pred_check
      _
    $region11: #{tpu_custom_call.1} parent=1 // pred_check_branch
      %22 = sbr.rel (0) target = $region13
    $region12: #{tpu_custom_call.1} parent=1 // pred_region
      _
    $region13: #{tpu_custom_call.1} parent=1 // pred_fallthru
      _
    // Predicated region
    $region14: #{tpu_custom_call.1} parent=1 // pred_check
      _
    $region15: #{tpu_custom_call.1} parent=1 // pred_check_branch
      %24 = sbr.rel (0) target = $region17
    $region16: #{tpu_custom_call.1} parent=1 // pred_region
      _
    $region17: #{tpu_custom_call.1} parent=1 // pred_fallthru
      _
    // Predicated region
    $region18: #{tpu_custom_call.1} parent=1 // pred_check
      _
    $region19: #{tpu_custom_call.1} parent=1 // pred_check_branch
      %26 = sbr.rel (0) target = $region21
    $region20: #{tpu_custom_call.1} parent=1 // pred_region
      _
    $region21: #{tpu_custom_call.1} parent=1 // pred_fallthru
      _
    // Predicated region
    $region22: #{tpu_custom_call.1} parent=1 // pred_check
      _
    $region23: #{tpu_custom_call.1} parent=1 // pred_check_branch
      %28 = sbr.rel (0) target = $region25
    $region24: #{tpu_custom_call.1} parent=1 // pred_region
      _
    $region25: #{tpu_custom_call.1} parent=1 // pred_fallthru
      _
    // Predicated region
    $region26: #{tpu_custom_call.1} parent=1 // pred_check
      _
    $region27: #{tpu_custom_call.1} parent=1 // pred_check_branch
      %30 = sbr.rel (0) target = $region29
    $region28: #{tpu_custom_call.1} parent=1 // pred_region
      _
    $region29: #{tpu_custom_call.1} parent=1 // pred_fallthru
      _
    // Predicated region
    $region30: #{tpu_custom_call.1} parent=1 // pred_check
      _
    $region31: #{tpu_custom_call.1} parent=1 // pred_check_branch
      %32 = sbr.rel (0) target = $region33
    $region32: #{tpu_custom_call.1} parent=1 // pred_region
      _
    $region33: #{tpu_custom_call.1} parent=1 // pred_fallthru
      _
    // Predicated region
    $region34: #{tpu_custom_call.1} parent=1 // pred_check
      _
    $region35: #{tpu_custom_call.1} parent=1 // pred_check_branch
      %34 = sbr.rel (0) target = $region37
    $region36: #{tpu_custom_call.1} parent=1 // pred_region
      _
    $region37: #{tpu_custom_call.1} parent=1 // pred_fallthru
      _
    %v35 = vld [vmem:[%s0] sm:$0xff]
    %v36 = vld [vmem:[%s0 + $0x8] sm:$0xff]
    %v37 = vld [vmem:[%s0 + $0x10] sm:$0xff]
    %v38 = vld [vmem:[%s0 + $0x18] sm:$0xff]
    %v39 = vld [vmem:[%s0 + $0x20] sm:$0xff]
    %v40 = vld [vmem:[%s0 + $0x28] sm:$0xff]
    %v41 = vld [vmem:[%s0 + $0x30] sm:$0xff]
    %v42 = vld [vmem:[%s0 + $0x38] sm:$0xff]
    %v43 = vld [vmem:[%s0 + $0x40] sm:$0xff]
    %v44 = vld [vmem:[%s0 + $0x48] sm:$0xff]
    %v45 = vld [vmem:[%s0 + $0x50] sm:$0xff]
    %v46 = vld [vmem:[%s0 + $0x58] sm:$0xff]
    %v47 = vld [vmem:[%s0 + $0x60] sm:$0xff]
    %v48 = vld [vmem:[%s0 + $0x68] sm:$0xff]
    %v49 = vld [vmem:[%s0 + $0x70] sm:$0xff]
    %v50 = vld [vmem:[%s0 + $0x78] sm:$0xff]
    %v51 = vld [vmem:[%s2] sm:$0xff]
    %v52 = vld [vmem:[%s2 + $0x8] sm:$0xff]
    %v53 = vld [vmem:[%s1] sm:$0xff]
    %v54 = vld [vmem:[%s1 + $0x8] sm:$0xff]
    %v55 = vld [vmem:[%s1 + $0x10] sm:$0xff]
    %v56 = vld [vmem:[%s1 + $0x18] sm:$0xff]
    %v57 = vld [vmem:[%s1 + $0x20] sm:$0xff]
    %v58 = vld [vmem:[%s1 + $0x28] sm:$0xff]
    %v59 = vld [vmem:[%s1 + $0x30] sm:$0xff]
    %v60 = vld [vmem:[%s1 + $0x38] sm:$0xff]
    %v61 = vld [vmem:[%s1 + $0x40] sm:$0xff]
    %v62 = vld [vmem:[%s1 + $0x48] sm:$0xff]
    %v63 = vld [vmem:[%s1 + $0x50] sm:$0xff]
    %v64 = vld [vmem:[%s1 + $0x58] sm:$0xff]
    %v65 = vld [vmem:[%s1 + $0x60] sm:$0xff]
    %v66 = vld [vmem:[%s1 + $0x68] sm:$0xff]
    %v67 = vld [vmem:[%s1 + $0x70] sm:$0xff]
    %v68 = vld [vmem:[%s1 + $0x78] sm:$0xff]
    %v69 = vld [vmem:[%s3] sm:$0xf]
    %vm70 = vcmask 31744
    %v72 = vsel %vm70, %v53, 0
    %v75 = vsel %vm70, %v54, 0
    %v78 = vsel %vm70, %v55, 0
    %v81 = vsel %vm70, %v56, 0
    %v84 = vsel %vm70, %v57, 0
    %v87 = vsel %vm70, %v58, 0
    %v90 = vsel %vm70, %v59, 0
    %v93 = vsel %vm70, %v60, 0
    %v96 = vsel %vm70, %v61, 0
    %v99 = vsel %vm70, %v62, 0
    %v102 = vsel %vm70, %v63, 0
    %v105 = vsel %vm70, %v64, 0
    %v108 = vsel %vm70, %v65, 0
    %v111 = vsel %vm70, %v66, 0
    %v114 = vsel %vm70, %v67, 0
    %v117 = vsel %vm70, %v68, 0
    %vm119 = vcmask 1043456
    %v121 = vsel %vm119, %v69, 0
    %123 = vmatpush.msra.mxu0 0.0
    %124 = vmatpush.msra.mxu0 0.0
    %125 = vmatpush.msra.mxu0 0.0
    %126 = vmatpush.msra.mxu0 0.0
    %127 = vmatpush.msra.mxu0 0.0
    %128 = vmatpush.msra.mxu0 0.0
    %129 = vmatpush.msra.mxu0 0.0
    %130 = vmatpush.msra.mxu0 0.0
    %131 = vmatpush.msra.mxu0 0.0
    %132 = vmatpush.msra.mxu0 0.0
    %133 = vmatpush.msra.mxu0 0.0
    %134 = vmatpush.msra.mxu0 0.0
    %135 = vmatpush.msra.mxu0 0.0
    %136 = vmatpush.msra.mxu0 0.0
    %137 = vmatpush.msra.mxu0 0.0
    %138 = vmatpush.msra.mxu0 %v121
    %139 = vmatmul.f32.gmra.mxu0 %v72
    %v140 = vpop.f32.mrf.mxu0
    %v141 = vadd.f32 0.0, %v140
    %142 = vmatmul.f32.gmra.mxu0 %v75
    %v143 = vpop.f32.mrf.mxu0
    %v144 = vadd.f32 0.0, %v143
    %145 = vmatmul.f32.gmra.mxu0 %v78
    %v146 = vpop.f32.mrf.mxu0
    %v147 = vadd.f32 0.0, %v146
    %148 = vmatmul.f32.gmra.mxu0 %v81
    %v149 = vpop.f32.mrf.mxu0
    %v150 = vadd.f32 0.0, %v149
    %151 = vmatmul.f32.gmra.mxu0 %v84
    %v152 = vpop.f32.mrf.mxu0
    %v153 = vadd.f32 0.0, %v152
    %154 = vmatmul.f32.gmra.mxu0 %v87
    %v155 = vpop.f32.mrf.mxu0
    %v156 = vadd.f32 0.0, %v155
    %157 = vmatmul.f32.gmra.mxu0 %v90
    %v158 = vpop.f32.mrf.mxu0
    %v159 = vadd.f32 0.0, %v158
    %160 = vmatmul.f32.gmra.mxu0 %v93
    %v161 = vpop.f32.mrf.mxu0
    %v162 = vadd.f32 0.0, %v161
    %163 = vmatmul.f32.gmra.mxu0 %v96
    %v164 = vpop.f32.mrf.mxu0
    %v165 = vadd.f32 0.0, %v164
    %166 = vmatmul.f32.gmra.mxu0 %v99
    %v167 = vpop.f32.mrf.mxu0
    %v168 = vadd.f32 0.0, %v167
    %169 = vmatmul.f32.gmra.mxu0 %v102
    %v170 = vpop.f32.mrf.mxu0
    %v171 = vadd.f32 0.0, %v170
    %172 = vmatmul.f32.gmra.mxu0 %v105
    %v173 = vpop.f32.mrf.mxu0
    %v174 = vadd.f32 0.0, %v173
    %175 = vmatmul.f32.gmra.mxu0 %v108
    %v176 = vpop.f32.mrf.mxu0
    %v177 = vadd.f32 0.0, %v176
    %178 = vmatmul.f32.gmra.mxu0 %v111
    %v179 = vpop.f32.mrf.mxu0
    %v180 = vadd.f32 0.0, %v179
    %181 = vmatmul.f32.gmra.mxu0 %v114
    %v182 = vpop.f32.mrf.mxu0
    %v183 = vadd.f32 0.0, %v182
    %184 = vmatmul.f32.gmra.mxu0 %v117
    %v185 = vpop.f32.mrf.mxu0
    %v186 = vadd.f32 0.0, %v185
    %187 = vdwg.mxu0
    %vm188 = vcmask 130048
    %v190 = vsel %vm188, %v35, 0
    %v193 = vsel %vm188, %v36, 0
    %v196 = vsel %vm188, %v37, 0
    %v199 = vsel %vm188, %v38, 0
    %v202 = vsel %vm188, %v39, 0
    %v205 = vsel %vm188, %v40, 0
    %v208 = vsel %vm188, %v41, 0
    %v211 = vsel %vm188, %v42, 0
    %v214 = vsel %vm188, %v43, 0
    %v217 = vsel %vm188, %v44, 0
    %v220 = vsel %vm188, %v45, 0
    %v223 = vsel %vm188, %v46, 0
    %v226 = vsel %vm188, %v47, 0
    %v229 = vsel %vm188, %v48, 0
    %v232 = vsel %vm188, %v49, 0
    %v235 = vsel %vm188, %v50, 0
    %237 = vmatpush.msra.mxu0 0.0
    %238 = vmatpush.msra.mxu0 0.0
    %239 = vmatpush.msra.mxu0 0.0
    %240 = vmatpush.msra.mxu0 0.0
    %241 = vmatpush.msra.mxu0 0.0
    %242 = vmatpush.msra.mxu0 0.0
    %243 = vmatpush.msra.mxu0 0.0
    %244 = vmatpush.msra.mxu0 0.0
    %245 = vmatpush.msra.mxu0 0.0
    %246 = vmatpush.msra.mxu0 0.0
    %247 = vmatpush.msra.mxu0 0.0
    %248 = vmatpush.msra.mxu0 0.0
    %249 = vmatpush.msra.mxu0 0.0
    %250 = vmatpush.msra.mxu0 0.0
    %251 = vmatpush.msra.mxu0 %v52
    %252 = vmatpush.msra.mxu0 %v51
    %253 = vmatmul.f32.gmra.mxu0 %v190
    %v254 = vpop.f32.mrf.mxu0
    %v255 = vadd.f32 %v141, %v254
    %256 = vmatmul.f32.gmra.mxu0 %v193
    %v257 = vpop.f32.mrf.mxu0
    %v258 = vadd.f32 %v144, %v257
    %259 = vmatmul.f32.gmra.mxu0 %v196
    %v260 = vpop.f32.mrf.mxu0
    %v261 = vadd.f32 %v147, %v260
    %262 = vmatmul.f32.gmra.mxu0 %v199
    %v263 = vpop.f32.mrf.mxu0
    %v264 = vadd.f32 %v150, %v263
    %265 = vmatmul.f32.gmra.mxu0 %v202
    %v266 = vpop.f32.mrf.mxu0
    %v267 = vadd.f32 %v153, %v266
    %268 = vmatmul.f32.gmra.mxu0 %v205
    %v269 = vpop.f32.mrf.mxu0
    %v270 = vadd.f32 %v156, %v269
    %271 = vmatmul.f32.gmra.mxu0 %v208
    %v272 = vpop.f32.mrf.mxu0
    %v273 = vadd.f32 %v159, %v272
    %274 = vmatmul.f32.gmra.mxu0 %v211
    %v275 = vpop.f32.mrf.mxu0
    %v276 = vadd.f32 %v162, %v275
    %277 = vmatmul.f32.gmra.mxu0 %v214
    %v278 = vpop.f32.mrf.mxu0
    %v279 = vadd.f32 %v165, %v278
    %280 = vmatmul.f32.gmra.mxu0 %v217
    %v281 = vpop.f32.mrf.mxu0
    %v282 = vadd.f32 %v168, %v281
    %283 = vmatmul.f32.gmra.mxu0 %v220
    %v284 = vpop.f32.mrf.mxu0
    %v285 = vadd.f32 %v171, %v284
    %286 = vmatmul.f32.gmra.mxu0 %v223
    %v287 = vpop.f32.mrf.mxu0
    %v288 = vadd.f32 %v174, %v287
    %289 = vmatmul.f32.gmra.mxu0 %v226
    %v290 = vpop.f32.mrf.mxu0
    %v291 = vadd.f32 %v177, %v290
    %292 = vmatmul.f32.gmra.mxu0 %v229
    %v293 = vpop.f32.mrf.mxu0
    %v294 = vadd.f32 %v180, %v293
    %295 = vmatmul.f32.gmra.mxu0 %v232
    %v296 = vpop.f32.mrf.mxu0
    %v297 = vadd.f32 %v183, %v296
    %298 = vmatmul.f32.gmra.mxu0 %v235
    %v299 = vpop.f32.mrf.mxu0
    %v300 = vadd.f32 %v186, %v299
    %301 = vdwg.mxu0
    %v302 = vld [vmem:[%s4] sm:$0x1]
    %v304 = vperm.slane %v302, 0
    %v306 = vadd.f32 %v255, %v304
    %v307 = vadd.f32 %v258, %v304
    %v308 = vadd.f32 %v261, %v304
    %v309 = vadd.f32 %v264, %v304
    %v310 = vadd.f32 %v267, %v304
    %v311 = vadd.f32 %v270, %v304
    %v312 = vadd.f32 %v273, %v304
    %v313 = vadd.f32 %v276, %v304
    %v314 = vadd.f32 %v279, %v304
    %v315 = vadd.f32 %v282, %v304
    %v316 = vadd.f32 %v285, %v304
    %v317 = vadd.f32 %v288, %v304
    %v318 = vadd.f32 %v291, %v304
    %v319 = vadd.f32 %v294, %v304
    %v320 = vadd.f32 %v297, %v304
    %v321 = vadd.f32 %v300, %v304
    %v322 = vmax.f32 %v306, 0.0
    %v323 = vmax.f32 %v307, 0.0
    %v324 = vmax.f32 %v308, 0.0
    %v325 = vmax.f32 %v309, 0.0
    %v326 = vmax.f32 %v310, 0.0
    %v327 = vmax.f32 %v311, 0.0
    %v328 = vmax.f32 %v312, 0.0
    %v329 = vmax.f32 %v313, 0.0
    %v330 = vmax.f32 %v314, 0.0
    %v331 = vmax.f32 %v315, 0.0
    %v332 = vmax.f32 %v316, 0.0
    %v333 = vmax.f32 %v317, 0.0
    %v334 = vmax.f32 %v318, 0.0
    %v335 = vmax.f32 %v319, 0.0
    %v336 = vmax.f32 %v320, 0.0
    %v337 = vmax.f32 %v321, 0.0
    %v338 = vld [vmem:[%s5] sm:$0xff]
    %v339 = vld [vmem:[%s5 + $0x8] sm:$0xff]
    %v340 = vld [vmem:[%s5 + $0x10] sm:$0xff]
    %v341 = vld [vmem:[%s5 + $0x18] sm:$0xff]
    %v342 = vld [vmem:[%s6] sm:$0x1]
    %v344 = vperm.slane %v342, 0
    %vm346 = vcmask 261120
    %v348 = vsel %vm346, %v322, 0
    %v351 = vsel %vm346, %v323, 0
    %v354 = vsel %vm346, %v324, 0
    %v357 = vsel %vm346, %v325, 0
    %v360 = vsel %vm346, %v326, 0
    %v363 = vsel %vm346, %v327, 0
    %v366 = vsel %vm346, %v328, 0
    %v369 = vsel %vm346, %v329, 0
    %v372 = vsel %vm346, %v330, 0
    %v375 = vsel %vm346, %v331, 0
    %v378 = vsel %vm346, %v332, 0
    %v381 = vsel %vm346, %v333, 0
    %v384 = vsel %vm346, %v334, 0
    %v387 = vsel %vm346, %v335, 0
    %v390 = vsel %vm346, %v336, 0
    %v393 = vsel %vm346, %v337, 0
    %395 = vmatpush.msra.mxu0 0.0
    %396 = vmatpush.msra.mxu0 0.0
    %397 = vmatpush.msra.mxu0 0.0
    %398 = vmatpush.msra.mxu0 0.0
    %399 = vmatpush.msra.mxu0 0.0
    %400 = vmatpush.msra.mxu0 0.0
    %401 = vmatpush.msra.mxu0 0.0
    %402 = vmatpush.msra.mxu0 0.0
    %403 = vmatpush.msra.mxu0 0.0
    %404 = vmatpush.msra.mxu0 0.0
    %405 = vmatpush.msra.mxu0 0.0
    %406 = vmatpush.msra.mxu0 0.0
    %407 = vmatpush.msra.mxu0 %v341
    %408 = vmatpush.msra.mxu0 %v340
    %409 = vmatpush.msra.mxu0 %v339
    %410 = vmatpush.msra.mxu0 %v338
    %411 = vmatmul.f32.gmra.mxu0 %v348
    %v412 = vpop.f32.mrf.mxu0
    %v413 = vadd.f32 %v344, %v412
    %414 = vmatmul.f32.gmra.mxu0 %v351
    %v415 = vpop.f32.mrf.mxu0
    %v416 = vadd.f32 %v344, %v415
    %417 = vmatmul.f32.gmra.mxu0 %v354
    %v418 = vpop.f32.mrf.mxu0
    %v419 = vadd.f32 %v344, %v418
    %420 = vmatmul.f32.gmra.mxu0 %v357
    %v421 = vpop.f32.mrf.mxu0
    %v422 = vadd.f32 %v344, %v421
    %423 = vmatmul.f32.gmra.mxu0 %v360
    %v424 = vpop.f32.mrf.mxu0
    %v425 = vadd.f32 %v344, %v424
    %426 = vmatmul.f32.gmra.mxu0 %v363
    %v427 = vpop.f32.mrf.mxu0
    %v428 = vadd.f32 %v344, %v427
    %429 = vmatmul.f32.gmra.mxu0 %v366
    %v430 = vpop.f32.mrf.mxu0
    %v431 = vadd.f32 %v344, %v430
    %432 = vmatmul.f32.gmra.mxu0 %v369
    %v433 = vpop.f32.mrf.mxu0
    %v434 = vadd.f32 %v344, %v433
    %435 = vmatmul.f32.gmra.mxu0 %v372
    %v436 = vpop.f32.mrf.mxu0
    %v437 = vadd.f32 %v344, %v436
    %438 = vmatmul.f32.gmra.mxu0 %v375
    %v439 = vpop.f32.mrf.mxu0
    %v440 = vadd.f32 %v344, %v439
    %441 = vmatmul.f32.gmra.mxu0 %v378
    %v442 = vpop.f32.mrf.mxu0
    %v443 = vadd.f32 %v344, %v442
    %444 = vmatmul.f32.gmra.mxu0 %v381
    %v445 = vpop.f32.mrf.mxu0
    %v446 = vadd.f32 %v344, %v445
    %447 = vmatmul.f32.gmra.mxu0 %v384
    %v448 = vpop.f32.mrf.mxu0
    %v449 = vadd.f32 %v344, %v448
    %450 = vmatmul.f32.gmra.mxu0 %v387
    %v451 = vpop.f32.mrf.mxu0
    %v452 = vadd.f32 %v344, %v451
    %453 = vmatmul.f32.gmra.mxu0 %v390
    %v454 = vpop.f32.mrf.mxu0
    %v455 = vadd.f32 %v344, %v454
    %456 = vmatmul.f32.gmra.mxu0 %v393
    %v457 = vpop.f32.mrf.mxu0
    %v458 = vadd.f32 %v344, %v457
    %459 = vdwg.mxu0
    %v460 = vmax.f32 %v413, 0.0
    %v461 = vmax.f32 %v416, 0.0
    %v462 = vmax.f32 %v419, 0.0
    %v463 = vmax.f32 %v422, 0.0
    %v464 = vmax.f32 %v425, 0.0
    %v465 = vmax.f32 %v428, 0.0
    %v466 = vmax.f32 %v431, 0.0
    %v467 = vmax.f32 %v434, 0.0
    %v468 = vmax.f32 %v437, 0.0
    %v469 = vmax.f32 %v440, 0.0
    %v470 = vmax.f32 %v443, 0.0
    %v471 = vmax.f32 %v446, 0.0
    %v472 = vmax.f32 %v449, 0.0
    %v473 = vmax.f32 %v452, 0.0
    %v474 = vmax.f32 %v455, 0.0
    %v475 = vmax.f32 %v458, 0.0
    %v476 = vld [vmem:[%s7] sm:$0x1]
    %v477 = vld [vmem:[#allocation2] sm:$0x1]
    %479 = vset.pattern.permute.xlu0 0
    %480 = vperm.xlu0 %479, %v477
    %v481 = vpop.permute.xlu0 %480
    %v483 = vperm.slane %v481, 0
    %v485 = vsel %vm346, %v476, 0
    %v488 = vsel %vm346, %v460, 0
    %v491 = vsel %vm346, %v461, 0
    %v494 = vsel %vm346, %v462, 0
    %v497 = vsel %vm346, %v463, 0
    %v500 = vsel %vm346, %v464, 0
    %v503 = vsel %vm346, %v465, 0
    %v506 = vsel %vm346, %v466, 0
    %v509 = vsel %vm346, %v467, 0
    %v512 = vsel %vm346, %v468, 0
    %v515 = vsel %vm346, %v469, 0
    %v518 = vsel %vm346, %v470, 0
    %v521 = vsel %vm346, %v471, 0
    %v524 = vsel %vm346, %v472, 0
    %v527 = vsel %vm346, %v473, 0
    %v530 = vsel %vm346, %v474, 0
    %v533 = vsel %vm346, %v475, 0
    %535 = vmatpush.xpose.msra.mxu0 %v533
    %536 = vmatpush.xpose.msra.mxu0 %v530
    %537 = vmatpush.xpose.msra.mxu0 %v527
    %538 = vmatpush.xpose.msra.mxu0 %v524
    %539 = vmatpush.xpose.msra.mxu0 %v521
    %540 = vmatpush.xpose.msra.mxu0 %v518
    %541 = vmatpush.xpose.msra.mxu0 %v515
    %542 = vmatpush.xpose.msra.mxu0 %v512
    %543 = vmatpush.xpose.msra.mxu0 %v509
    %544 = vmatpush.xpose.msra.mxu0 %v506
    %545 = vmatpush.xpose.msra.mxu0 %v503
    %546 = vmatpush.xpose.msra.mxu0 %v500
    %547 = vmatpush.xpose.msra.mxu0 %v497
    %548 = vmatpush.xpose.msra.mxu0 %v494
    %549 = vmatpush.xpose.msra.mxu0 %v491
    %550 = vmatpush.xpose.msra.mxu0 %v488
    %551 = vmatmul.f32.gmra.mxu0 %v485
    %v552 = vpop.f32.mrf.mxu0
    %v553 = vadd.f32 %v483, %v552
    %554 = vdwg.mxu0
    %555 = vst [vmem:[#allocation3] sm:$0x1] %v553
    // Predicated region
    $region38: #{tpu_custom_call.1} parent=1 // pred_check
      _
    $region39: #{tpu_custom_call.1} parent=1 // pred_check_branch
      %557 = sbr.rel (0) target = $region41
    $region40: #{tpu_custom_call.1} parent=1 // pred_region
      %559 = vsyncadd [#allocation4], 0
      %s561 = sshll.u32 [#allocation3], 4
      %s562 = int_to_ptr.vmem [resolvable:$true] %s561
      %s563 = sshll.u32 %s9, 4
      %s564 = int_to_ptr.hbm [resolvable:$true] %s563
      %566 = dma.vmem_to_hbm [thread:$0]  %s562, 16, %s564, [#allocation4]
    $region41: #{tpu_custom_call.1} parent=1 // pred_fallthru
      _
    // Predicated region
    $region42: #{tpu_custom_call.1} parent=1 // pred_check
      _
    $region43: #{tpu_custom_call.1} parent=1 // pred_check_branch
      %568 = sbr.rel (0) target = $region45
    $region44: #{tpu_custom_call.1} parent=1 // pred_region
      %570 = dma.done [#allocation4], 16
    $region45: #{tpu_custom_call.1} parent=1 // pred_fallthru
      _
    %571 = vsyncpa [#allocation4], 1

</llo_original>
